<compile_context>
chip_gen: v5e
topology: v5e:2x2
jax: 0.10.0
libtpu: 0.0.40
codegen_flags: <defaults>
</compile_context>

<pallas_src>
import jax
import jax.numpy as jnp
from jax import lax
from jax.experimental import pallas as pl
from jax.experimental.pallas import tpu as pltpu

C_IN, C_OUT, KH, KW = 3, 8, 2, 2
STRIDE = 1
DILATION = 2
PAD = 3
H_IN, W_IN = 128, 64
LANE = 128
H_OUT = H_IN + 2 * PAD - DILATION * (KH - 1)   # 132
W_OUT = W_IN + 2 * PAD - DILATION * (KW - 1)   # 68


def fused_conv_mean_sigmoid_kernel(x_ref, w_ref, b_ref, out_ref):
    # x_ref  : VMEM (3, 64, 128) f32  -- lane-dense reshape of the NCHW input
    # w_ref  : SMEM (96,)        f32  -- flattened OIHW conv weight
    # b_ref  : SMEM (8,)         f32  -- conv bias
    # out_ref: VMEM (1, 1)       f32  -- final scalar result

    # ---- scalar-slot work (fully hidden under the input DMA) -------------
    # per-input-channel weight sums: wsum[ci] = sum_{co,kh,kw} w[co,ci,kh,kw]
    wsums = []
    for ci in range(C_IN):
        s = jnp.float32(0.0)
        for co in range(C_OUT):
            base = co * (C_IN * KH * KW) + ci * (KH * KW)
            for k in range(KH * KW):
                s = s + w_ref[base + k]
        wsums.append(s)

    b_sum = jnp.float32(0.0)
    for co in range(C_OUT):
        b_sum = b_sum + b_ref[co]

    # ---- vector work: sublane sums (VPU) -> weighted combine -> 1 XLU reduce
    col = wsums[0] * jnp.sum(x_ref[0], axis=0, keepdims=True)          # (1,128)
    col = col + wsums[1] * jnp.sum(x_ref[1], axis=0, keepdims=True)
    col = col + wsums[2] * jnp.sum(x_ref[2], axis=0, keepdims=True)
    wx_total = jnp.sum(col, keepdims=True)                             # (1,1)

    total = wx_total + b_sum * jnp.float32(H_OUT * W_OUT)
    mean = total * jnp.float32(1.0 / (C_OUT * H_OUT * W_OUT))          # mean(v1)
    v3 = jax.nn.sigmoid(mean)                                          # sigmoid(v2)
    # vflip(0-d) -> identity; conv2d(v4, weight=1, bias=10) -> v4 * 1 + 10
    out_ref[...] = v3 + 10.0


@jax.jit
def model_forward(x, w, b):
    # x: (1, 3, 128, 64) NCHW, w: (8, 3, 2, 2), b: (8,)
    # The collapse is exact only for stride=1, zero padding, PAD >= DILATION*(K-1).
    assert STRIDE == 1, "conv+mean collapse assumes stride=1"
    assert PAD >= DILATION * (KH - 1) and PAD >= DILATION * (KW - 1), (
        "conv+mean collapse requires PAD >= DILATION*(K-1)")
    assert (H_IN * W_IN) % LANE == 0

    # Free row-major reshape to a lane-dense layout; per-channel sum invariant.
    x_r = x.astype(jnp.float32).reshape(C_IN, (H_IN * W_IN) // LANE, LANE)
    w_flat = w.astype(jnp.float32).reshape(-1)    # (96,)
    b_f = b.astype(jnp.float32)                   # (8,)

    out = pl.pallas_call(
        fused_conv_mean_sigmoid_kernel,
        out_shape=jax.ShapeDtypeStruct((1, 1), jnp.float32),
        in_specs=[
            pl.BlockSpec(memory_space=pltpu.MemorySpace.VMEM),
            pl.BlockSpec(memory_space=pltpu.MemorySpace.SMEM),
            pl.BlockSpec(memory_space=pltpu.MemorySpace.SMEM),
        ],
        out_specs=pl.BlockSpec(memory_space=pltpu.MemorySpace.VMEM),
    )(x_r, w_flat, b_f)
    return out[0, 0]


def reference_forward(x, w, b):
    conv = lax.conv_general_dilated(
        x, w,
        window_strides=(STRIDE, STRIDE),
        padding=((PAD, PAD), (PAD, PAD)),
        rhs_dilation=(DILATION, DILATION),
        dimension_numbers=("NCHW", "OIHW", "NCHW"),
    ) + b[None, :, None, None]
    return jax.nn.sigmoid(jnp.mean(conv)) * 1.0 + 10.0


if __name__ == "__main__":
    key = jax.random.PRNGKey(0)
    kx, kw, kb = jax.random.split(key, 3)

    x1 = jax.random.normal(kx, (1, C_IN, H_IN, W_IN), dtype=jnp.float32)

    # Deterministic Conv2d(3, 8, 2) parameter init (uniform in +/- 1/sqrt(fan_in))
    fan_in = C_IN * KH * KW
    bound = 1.0 / (fan_in ** 0.5)
    weight = jax.random.uniform(kw, (C_OUT, C_IN, KH, KW), jnp.float32, -bound, bound)
    bias = jax.random.uniform(kb, (C_OUT,), jnp.float32, -bound, bound)

    out = jax.block_until_ready(model_forward(x1, weight, bias))
    ref = jax.block_until_ready(reference_forward(x1, weight, bias))

    assert jnp.allclose(out, ref, atol=1e-4, rtol=1e-4), (out, ref)
    print("KERNEL_OK")
</pallas_src>

<mosaic_0001>
module attributes {stable_mosaic.version = 11 : i64} {
  func.func @fused_conv_mean_sigmoid_kernel(%arg0: memref<3x64x128xf32, #tpu.memory_space<vmem>>, %arg1: memref<96xf32, #tpu.memory_space<smem>>, %arg2: memref<8xf32, #tpu.memory_space<smem>>, %arg3: memref<1x1xf32, #tpu.memory_space<vmem>>) attributes {dimension_semantics = [], scalar_prefetch = 0 : i64, scratch_operands = 0 : i64, tpu.core_type = #tpu.core_type<tc>} {
    %c0 = arith.constant 0 : index
    %0 = memref.load %arg1[%c0] : memref<96xf32, #tpu.memory_space<smem>>
    %cst = arith.constant 0.000000e+00 : f32
    %1 = arith.addf %cst, %0 : f32
    %c1 = arith.constant 1 : index
    %2 = memref.load %arg1[%c1] : memref<96xf32, #tpu.memory_space<smem>>
    %3 = arith.addf %1, %2 : f32
    %c2 = arith.constant 2 : index
    %4 = memref.load %arg1[%c2] : memref<96xf32, #tpu.memory_space<smem>>
    %5 = arith.addf %3, %4 : f32
    %c3 = arith.constant 3 : index
    %6 = memref.load %arg1[%c3] : memref<96xf32, #tpu.memory_space<smem>>
    %7 = arith.addf %5, %6 : f32
    %c12 = arith.constant 12 : index
    %8 = memref.load %arg1[%c12] : memref<96xf32, #tpu.memory_space<smem>>
    %9 = arith.addf %7, %8 : f32
    %c13 = arith.constant 13 : index
    %10 = memref.load %arg1[%c13] : memref<96xf32, #tpu.memory_space<smem>>
    %11 = arith.addf %9, %10 : f32
    %c14 = arith.constant 14 : index
    %12 = memref.load %arg1[%c14] : memref<96xf32, #tpu.memory_space<smem>>
    %13 = arith.addf %11, %12 : f32
    %c15 = arith.constant 15 : index
    %14 = memref.load %arg1[%c15] : memref<96xf32, #tpu.memory_space<smem>>
    %15 = arith.addf %13, %14 : f32
    %c24 = arith.constant 24 : index
    %16 = memref.load %arg1[%c24] : memref<96xf32, #tpu.memory_space<smem>>
    %17 = arith.addf %15, %16 : f32
    %c25 = arith.constant 25 : index
    %18 = memref.load %arg1[%c25] : memref<96xf32, #tpu.memory_space<smem>>
    %19 = arith.addf %17, %18 : f32
    %c26 = arith.constant 26 : index
    %20 = memref.load %arg1[%c26] : memref<96xf32, #tpu.memory_space<smem>>
    %21 = arith.addf %19, %20 : f32
    %c27 = arith.constant 27 : index
    %22 = memref.load %arg1[%c27] : memref<96xf32, #tpu.memory_space<smem>>
    %23 = arith.addf %21, %22 : f32
    %c36 = arith.constant 36 : index
    %24 = memref.load %arg1[%c36] : memref<96xf32, #tpu.memory_space<smem>>
    %25 = arith.addf %23, %24 : f32
    %c37 = arith.constant 37 : index
    %26 = memref.load %arg1[%c37] : memref<96xf32, #tpu.memory_space<smem>>
    %27 = arith.addf %25, %26 : f32
    %c38 = arith.constant 38 : index
    %28 = memref.load %arg1[%c38] : memref<96xf32, #tpu.memory_space<smem>>
    %29 = arith.addf %27, %28 : f32
    %c39 = arith.constant 39 : index
    %30 = memref.load %arg1[%c39] : memref<96xf32, #tpu.memory_space<smem>>
    %31 = arith.addf %29, %30 : f32
    %c48 = arith.constant 48 : index
    %32 = memref.load %arg1[%c48] : memref<96xf32, #tpu.memory_space<smem>>
    %33 = arith.addf %31, %32 : f32
    %c49 = arith.constant 49 : index
    %34 = memref.load %arg1[%c49] : memref<96xf32, #tpu.memory_space<smem>>
    %35 = arith.addf %33, %34 : f32
    %c50 = arith.constant 50 : index
    %36 = memref.load %arg1[%c50] : memref<96xf32, #tpu.memory_space<smem>>
    %37 = arith.addf %35, %36 : f32
    %c51 = arith.constant 51 : index
    %38 = memref.load %arg1[%c51] : memref<96xf32, #tpu.memory_space<smem>>
    %39 = arith.addf %37, %38 : f32
    %c60 = arith.constant 60 : index
    %40 = memref.load %arg1[%c60] : memref<96xf32, #tpu.memory_space<smem>>
    %41 = arith.addf %39, %40 : f32
    %c61 = arith.constant 61 : index
    %42 = memref.load %arg1[%c61] : memref<96xf32, #tpu.memory_space<smem>>
    %43 = arith.addf %41, %42 : f32
    %c62 = arith.constant 62 : index
    %44 = memref.load %arg1[%c62] : memref<96xf32, #tpu.memory_space<smem>>
    %45 = arith.addf %43, %44 : f32
    %c63 = arith.constant 63 : index
    %46 = memref.load %arg1[%c63] : memref<96xf32, #tpu.memory_space<smem>>
    %47 = arith.addf %45, %46 : f32
    %c72 = arith.constant 72 : index
    %48 = memref.load %arg1[%c72] : memref<96xf32, #tpu.memory_space<smem>>
    %49 = arith.addf %47, %48 : f32
    %c73 = arith.constant 73 : index
    %50 = memref.load %arg1[%c73] : memref<96xf32, #tpu.memory_space<smem>>
    %51 = arith.addf %49, %50 : f32
    %c74 = arith.constant 74 : index
    %52 = memref.load %arg1[%c74] : memref<96xf32, #tpu.memory_space<smem>>
    %53 = arith.addf %51, %52 : f32
    %c75 = arith.constant 75 : index
    %54 = memref.load %arg1[%c75] : memref<96xf32, #tpu.memory_space<smem>>
    %55 = arith.addf %53, %54 : f32
    %c84 = arith.constant 84 : index
    %56 = memref.load %arg1[%c84] : memref<96xf32, #tpu.memory_space<smem>>
    %57 = arith.addf %55, %56 : f32
    %c85 = arith.constant 85 : index
    %58 = memref.load %arg1[%c85] : memref<96xf32, #tpu.memory_space<smem>>
    %59 = arith.addf %57, %58 : f32
    %c86 = arith.constant 86 : index
    %60 = memref.load %arg1[%c86] : memref<96xf32, #tpu.memory_space<smem>>
    %61 = arith.addf %59, %60 : f32
    %c87 = arith.constant 87 : index
    %62 = memref.load %arg1[%c87] : memref<96xf32, #tpu.memory_space<smem>>
    %63 = arith.addf %61, %62 : f32
    %c4 = arith.constant 4 : index
    %64 = memref.load %arg1[%c4] : memref<96xf32, #tpu.memory_space<smem>>
    %cst_0 = arith.constant 0.000000e+00 : f32
    %65 = arith.addf %cst_0, %64 : f32
    %c5 = arith.constant 5 : index
    %66 = memref.load %arg1[%c5] : memref<96xf32, #tpu.memory_space<smem>>
    %67 = arith.addf %65, %66 : f32
    %c6 = arith.constant 6 : index
    %68 = memref.load %arg1[%c6] : memref<96xf32, #tpu.memory_space<smem>>
    %69 = arith.addf %67, %68 : f32
    %c7 = arith.constant 7 : index
    %70 = memref.load %arg1[%c7] : memref<96xf32, #tpu.memory_space<smem>>
    %71 = arith.addf %69, %70 : f32
    %c16 = arith.constant 16 : index
    %72 = memref.load %arg1[%c16] : memref<96xf32, #tpu.memory_space<smem>>
    %73 = arith.addf %71, %72 : f32
    %c17 = arith.constant 17 : index
    %74 = memref.load %arg1[%c17] : memref<96xf32, #tpu.memory_space<smem>>
    %75 = arith.addf %73, %74 : f32
    %c18 = arith.constant 18 : index
    %76 = memref.load %arg1[%c18] : memref<96xf32, #tpu.memory_space<smem>>
    %77 = arith.addf %75, %76 : f32
    %c19 = arith.constant 19 : index
    %78 = memref.load %arg1[%c19] : memref<96xf32, #tpu.memory_space<smem>>
    %79 = arith.addf %77, %78 : f32
    %c28 = arith.constant 28 : index
    %80 = memref.load %arg1[%c28] : memref<96xf32, #tpu.memory_space<smem>>
    %81 = arith.addf %79, %80 : f32
    %c29 = arith.constant 29 : index
    %82 = memref.load %arg1[%c29] : memref<96xf32, #tpu.memory_space<smem>>
    %83 = arith.addf %81, %82 : f32
    %c30 = arith.constant 30 : index
    %84 = memref.load %arg1[%c30] : memref<96xf32, #tpu.memory_space<smem>>
    %85 = arith.addf %83, %84 : f32
    %c31 = arith.constant 31 : index
    %86 = memref.load %arg1[%c31] : memref<96xf32, #tpu.memory_space<smem>>
    %87 = arith.addf %85, %86 : f32
    %c40 = arith.constant 40 : index
    %88 = memref.load %arg1[%c40] : memref<96xf32, #tpu.memory_space<smem>>
    %89 = arith.addf %87, %88 : f32
    %c41 = arith.constant 41 : index
    %90 = memref.load %arg1[%c41] : memref<96xf32, #tpu.memory_space<smem>>
    %91 = arith.addf %89, %90 : f32
    %c42 = arith.constant 42 : index
    %92 = memref.load %arg1[%c42] : memref<96xf32, #tpu.memory_space<smem>>
    %93 = arith.addf %91, %92 : f32
    %c43 = arith.constant 43 : index
    %94 = memref.load %arg1[%c43] : memref<96xf32, #tpu.memory_space<smem>>
    %95 = arith.addf %93, %94 : f32
    %c52 = arith.constant 52 : index
    %96 = memref.load %arg1[%c52] : memref<96xf32, #tpu.memory_space<smem>>
    %97 = arith.addf %95, %96 : f32
    %c53 = arith.constant 53 : index
    %98 = memref.load %arg1[%c53] : memref<96xf32, #tpu.memory_space<smem>>
    %99 = arith.addf %97, %98 : f32
    %c54 = arith.constant 54 : index
    %100 = memref.load %arg1[%c54] : memref<96xf32, #tpu.memory_space<smem>>
    %101 = arith.addf %99, %100 : f32
    %c55 = arith.constant 55 : index
    %102 = memref.load %arg1[%c55] : memref<96xf32, #tpu.memory_space<smem>>
    %103 = arith.addf %101, %102 : f32
    %c64 = arith.constant 64 : index
    %104 = memref.load %arg1[%c64] : memref<96xf32, #tpu.memory_space<smem>>
    %105 = arith.addf %103, %104 : f32
    %c65 = arith.constant 65 : index
    %106 = memref.load %arg1[%c65] : memref<96xf32, #tpu.memory_space<smem>>
    %107 = arith.addf %105, %106 : f32
    %c66 = arith.constant 66 : index
    %108 = memref.load %arg1[%c66] : memref<96xf32, #tpu.memory_space<smem>>
    %109 = arith.addf %107, %108 : f32
    %c67 = arith.constant 67 : index
    %110 = memref.load %arg1[%c67] : memref<96xf32, #tpu.memory_space<smem>>
    %111 = arith.addf %109, %110 : f32
    %c76 = arith.constant 76 : index
    %112 = memref.load %arg1[%c76] : memref<96xf32, #tpu.memory_space<smem>>
    %113 = arith.addf %111, %112 : f32
    %c77 = arith.constant 77 : index
    %114 = memref.load %arg1[%c77] : memref<96xf32, #tpu.memory_space<smem>>
    %115 = arith.addf %113, %114 : f32
    %c78 = arith.constant 78 : index
    %116 = memref.load %arg1[%c78] : memref<96xf32, #tpu.memory_space<smem>>
    %117 = arith.addf %115, %116 : f32
    %c79 = arith.constant 79 : index
    %118 = memref.load %arg1[%c79] : memref<96xf32, #tpu.memory_space<smem>>
    %119 = arith.addf %117, %118 : f32
    %c88 = arith.constant 88 : index
    %120 = memref.load %arg1[%c88] : memref<96xf32, #tpu.memory_space<smem>>
    %121 = arith.addf %119, %120 : f32
    %c89 = arith.constant 89 : index
    %122 = memref.load %arg1[%c89] : memref<96xf32, #tpu.memory_space<smem>>
    %123 = arith.addf %121, %122 : f32
    %c90 = arith.constant 90 : index
    %124 = memref.load %arg1[%c90] : memref<96xf32, #tpu.memory_space<smem>>
    %125 = arith.addf %123, %124 : f32
    %c91 = arith.constant 91 : index
    %126 = memref.load %arg1[%c91] : memref<96xf32, #tpu.memory_space<smem>>
    %127 = arith.addf %125, %126 : f32
    %c8 = arith.constant 8 : index
    %128 = memref.load %arg1[%c8] : memref<96xf32, #tpu.memory_space<smem>>
    %cst_1 = arith.constant 0.000000e+00 : f32
    %129 = arith.addf %cst_1, %128 : f32
    %c9 = arith.constant 9 : index
    %130 = memref.load %arg1[%c9] : memref<96xf32, #tpu.memory_space<smem>>
    %131 = arith.addf %129, %130 : f32
    %c10 = arith.constant 10 : index
    %132 = memref.load %arg1[%c10] : memref<96xf32, #tpu.memory_space<smem>>
    %133 = arith.addf %131, %132 : f32
    %c11 = arith.constant 11 : index
    %134 = memref.load %arg1[%c11] : memref<96xf32, #tpu.memory_space<smem>>
    %135 = arith.addf %133, %134 : f32
    %c20 = arith.constant 20 : index
    %136 = memref.load %arg1[%c20] : memref<96xf32, #tpu.memory_space<smem>>
    %137 = arith.addf %135, %136 : f32
    %c21 = arith.constant 21 : index
    %138 = memref.load %arg1[%c21] : memref<96xf32, #tpu.memory_space<smem>>
    %139 = arith.addf %137, %138 : f32
    %c22 = arith.constant 22 : index
    %140 = memref.load %arg1[%c22] : memref<96xf32, #tpu.memory_space<smem>>
    %141 = arith.addf %139, %140 : f32
    %c23 = arith.constant 23 : index
    %142 = memref.load %arg1[%c23] : memref<96xf32, #tpu.memory_space<smem>>
    %143 = arith.addf %141, %142 : f32
    %c32 = arith.constant 32 : index
    %144 = memref.load %arg1[%c32] : memref<96xf32, #tpu.memory_space<smem>>
    %145 = arith.addf %143, %144 : f32
    %c33 = arith.constant 33 : index
    %146 = memref.load %arg1[%c33] : memref<96xf32, #tpu.memory_space<smem>>
    %147 = arith.addf %145, %146 : f32
    %c34 = arith.constant 34 : index
    %148 = memref.load %arg1[%c34] : memref<96xf32, #tpu.memory_space<smem>>
    %149 = arith.addf %147, %148 : f32
    %c35 = arith.constant 35 : index
    %150 = memref.load %arg1[%c35] : memref<96xf32, #tpu.memory_space<smem>>
    %151 = arith.addf %149, %150 : f32
    %c44 = arith.constant 44 : index
    %152 = memref.load %arg1[%c44] : memref<96xf32, #tpu.memory_space<smem>>
    %153 = arith.addf %151, %152 : f32
    %c45 = arith.constant 45 : index
    %154 = memref.load %arg1[%c45] : memref<96xf32, #tpu.memory_space<smem>>
    %155 = arith.addf %153, %154 : f32
    %c46 = arith.constant 46 : index
    %156 = memref.load %arg1[%c46] : memref<96xf32, #tpu.memory_space<smem>>
    %157 = arith.addf %155, %156 : f32
    %c47 = arith.constant 47 : index
    %158 = memref.load %arg1[%c47] : memref<96xf32, #tpu.memory_space<smem>>
    %159 = arith.addf %157, %158 : f32
    %c56 = arith.constant 56 : index
    %160 = memref.load %arg1[%c56] : memref<96xf32, #tpu.memory_space<smem>>
    %161 = arith.addf %159, %160 : f32
    %c57 = arith.constant 57 : index
    %162 = memref.load %arg1[%c57] : memref<96xf32, #tpu.memory_space<smem>>
    %163 = arith.addf %161, %162 : f32
    %c58 = arith.constant 58 : index
    %164 = memref.load %arg1[%c58] : memref<96xf32, #tpu.memory_space<smem>>
    %165 = arith.addf %163, %164 : f32
    %c59 = arith.constant 59 : index
    %166 = memref.load %arg1[%c59] : memref<96xf32, #tpu.memory_space<smem>>
    %167 = arith.addf %165, %166 : f32
    %c68 = arith.constant 68 : index
    %168 = memref.load %arg1[%c68] : memref<96xf32, #tpu.memory_space<smem>>
    %169 = arith.addf %167, %168 : f32
    %c69 = arith.constant 69 : index
    %170 = memref.load %arg1[%c69] : memref<96xf32, #tpu.memory_space<smem>>
    %171 = arith.addf %169, %170 : f32
    %c70 = arith.constant 70 : index
    %172 = memref.load %arg1[%c70] : memref<96xf32, #tpu.memory_space<smem>>
    %173 = arith.addf %171, %172 : f32
    %c71 = arith.constant 71 : index
    %174 = memref.load %arg1[%c71] : memref<96xf32, #tpu.memory_space<smem>>
    %175 = arith.addf %173, %174 : f32
    %c80 = arith.constant 80 : index
    %176 = memref.load %arg1[%c80] : memref<96xf32, #tpu.memory_space<smem>>
    %177 = arith.addf %175, %176 : f32
    %c81 = arith.constant 81 : index
    %178 = memref.load %arg1[%c81] : memref<96xf32, #tpu.memory_space<smem>>
    %179 = arith.addf %177, %178 : f32
    %c82 = arith.constant 82 : index
    %180 = memref.load %arg1[%c82] : memref<96xf32, #tpu.memory_space<smem>>
    %181 = arith.addf %179, %180 : f32
    %c83 = arith.constant 83 : index
    %182 = memref.load %arg1[%c83] : memref<96xf32, #tpu.memory_space<smem>>
    %183 = arith.addf %181, %182 : f32
    %c92 = arith.constant 92 : index
    %184 = memref.load %arg1[%c92] : memref<96xf32, #tpu.memory_space<smem>>
    %185 = arith.addf %183, %184 : f32
    %c93 = arith.constant 93 : index
    %186 = memref.load %arg1[%c93] : memref<96xf32, #tpu.memory_space<smem>>
    %187 = arith.addf %185, %186 : f32
    %c94 = arith.constant 94 : index
    %188 = memref.load %arg1[%c94] : memref<96xf32, #tpu.memory_space<smem>>
    %189 = arith.addf %187, %188 : f32
    %c95 = arith.constant 95 : index
    %190 = memref.load %arg1[%c95] : memref<96xf32, #tpu.memory_space<smem>>
    %191 = arith.addf %189, %190 : f32
    %c0_2 = arith.constant 0 : index
    %192 = memref.load %arg2[%c0_2] : memref<8xf32, #tpu.memory_space<smem>>
    %cst_3 = arith.constant 0.000000e+00 : f32
    %193 = arith.addf %cst_3, %192 : f32
    %c1_4 = arith.constant 1 : index
    %194 = memref.load %arg2[%c1_4] : memref<8xf32, #tpu.memory_space<smem>>
    %195 = arith.addf %193, %194 : f32
    %c2_5 = arith.constant 2 : index
    %196 = memref.load %arg2[%c2_5] : memref<8xf32, #tpu.memory_space<smem>>
    %197 = arith.addf %195, %196 : f32
    %c3_6 = arith.constant 3 : index
    %198 = memref.load %arg2[%c3_6] : memref<8xf32, #tpu.memory_space<smem>>
    %199 = arith.addf %197, %198 : f32
    %c4_7 = arith.constant 4 : index
    %200 = memref.load %arg2[%c4_7] : memref<8xf32, #tpu.memory_space<smem>>
    %201 = arith.addf %199, %200 : f32
    %c5_8 = arith.constant 5 : index
    %202 = memref.load %arg2[%c5_8] : memref<8xf32, #tpu.memory_space<smem>>
    %203 = arith.addf %201, %202 : f32
    %c6_9 = arith.constant 6 : index
    %204 = memref.load %arg2[%c6_9] : memref<8xf32, #tpu.memory_space<smem>>
    %205 = arith.addf %203, %204 : f32
    %c7_10 = arith.constant 7 : index
    %206 = memref.load %arg2[%c7_10] : memref<8xf32, #tpu.memory_space<smem>>
    %207 = arith.addf %205, %206 : f32
    %c0_11 = arith.constant 0 : index
    %c0_12 = arith.constant 0 : index
    %c0_13 = arith.constant 0 : index
    %208 = vector.load %arg0[%c0_11, %c0_12, %c0_13] : memref<3x64x128xf32, #tpu.memory_space<vmem>>, vector<1x64x128xf32>
    %209 = vector.shape_cast %208 : vector<1x64x128xf32> to vector<64x128xf32>
    %cst_14 = arith.constant dense<0.000000e+00> : vector<128xf32>
    %210 = vector.multi_reduction <add>, %209, %cst_14 [0] : vector<64x128xf32> to vector<128xf32>
    %211 = vector.shape_cast %210 : vector<128xf32> to vector<1x128xf32>
    %212 = vector.broadcast %63 : f32 to vector<1x128xf32>
    %213 = arith.mulf %212, %211 : vector<1x128xf32>
    %c1_15 = arith.constant 1 : index
    %c0_16 = arith.constant 0 : index
    %c0_17 = arith.constant 0 : index
    %214 = vector.load %arg0[%c1_15, %c0_16, %c0_17] : memref<3x64x128xf32, #tpu.memory_space<vmem>>, vector<1x64x128xf32>
    %215 = vector.shape_cast %214 : vector<1x64x128xf32> to vector<64x128xf32>
    %cst_18 = arith.constant dense<0.000000e+00> : vector<128xf32>
    %216 = vector.multi_reduction <add>, %215, %cst_18 [0] : vector<64x128xf32> to vector<128xf32>
    %217 = vector.shape_cast %216 : vector<128xf32> to vector<1x128xf32>
    %218 = vector.broadcast %127 : f32 to vector<1x128xf32>
    %219 = arith.mulf %218, %217 : vector<1x128xf32>
    %220 = arith.addf %213, %219 : vector<1x128xf32>
    %c2_19 = arith.constant 2 : index
    %c0_20 = arith.constant 0 : index
    %c0_21 = arith.constant 0 : index
    %221 = vector.load %arg0[%c2_19, %c0_20, %c0_21] : memref<3x64x128xf32, #tpu.memory_space<vmem>>, vector<1x64x128xf32>
    %222 = vector.shape_cast %221 : vector<1x64x128xf32> to vector<64x128xf32>
    %cst_22 = arith.constant dense<0.000000e+00> : vector<128xf32>
    %223 = vector.multi_reduction <add>, %222, %cst_22 [0] : vector<64x128xf32> to vector<128xf32>
    %224 = vector.shape_cast %223 : vector<128xf32> to vector<1x128xf32>
    %225 = vector.broadcast %191 : f32 to vector<1x128xf32>
    %226 = arith.mulf %225, %224 : vector<1x128xf32>
    %227 = arith.addf %220, %226 : vector<1x128xf32>
    %228 = vector.shape_cast %227 : vector<1x128xf32> to vector<1x1x128xf32>
    %cst_23 = arith.constant dense<0.000000e+00> : vector<1xf32>
    %229 = vector.multi_reduction <add>, %228, %cst_23 [1, 2] : vector<1x1x128xf32> to vector<1xf32>
    %230 = vector.shape_cast %229 : vector<1xf32> to vector<1x1x1xf32>
    %231 = vector.extract %230[0, 0, 0] : f32 from vector<1x1x1xf32>
    %232 = vector.broadcast %231 : f32 to vector<1x1xf32>
    %cst_24 = arith.constant 8.976000e+03 : f32
    %233 = arith.mulf %207, %cst_24 : f32
    %234 = vector.broadcast %233 : f32 to vector<1x1xf32>
    %235 = arith.addf %232, %234 : vector<1x1xf32>
    %cst_25 = arith.constant 1.39260246E-5 : f32
    %236 = vector.broadcast %cst_25 : f32 to vector<1x1xf32>
    %237 = arith.mulf %235, %236 : vector<1x1xf32>
    %238 = arith.negf %237 : vector<1x1xf32>
    %239 = math.exp %238 : vector<1x1xf32>
    %cst_26 = arith.constant 1.000000e+00 : f32
    %240 = vector.broadcast %cst_26 : f32 to vector<1x1xf32>
    %241 = arith.addf %240, %239 : vector<1x1xf32>
    %242 = arith.divf %240, %241 : vector<1x1xf32>
    %cst_27 = arith.constant 1.000000e+01 : f32
    %243 = vector.broadcast %cst_27 : f32 to vector<1x1xf32>
    %244 = arith.addf %242, %243 : vector<1x1xf32>
    %c0_28 = arith.constant 0 : index
    %c0_29 = arith.constant 0 : index
    %245 = vector.load %arg3[%c0_28, %c0_29] : memref<1x1xf32, #tpu.memory_space<vmem>>, vector<1x1xf32>
    tpu.vector_store %arg3[%c0_28, %c0_29], %244 {strides = array<i32>} : memref<1x1xf32, #tpu.memory_space<vmem>>, vector<1x1xf32>,
    return
  }
}

</mosaic_0001>

<llo_original>
// kernel: model_forward.1
$region0: #{model_forward.1}
  #allocation0 [shape = 'u32[]', space=smem, size = 0x4, offset = 0x4, fixed_abs, tag = 'smem constant byte address 0x4 - core index']
  #allocation1 [shape = 'u32[72,128]{1,0:T(1,128)}', space=vmem, size = 0x9000, scoped, tag = 'internal scratch']
  %s0 = inlined_call_operand.vmem [shape: f32[3,64,128], index: 0, kind: input, shape index: {}]
  %s1 = inlined_call_operand.vmem [shape: f32[96], index: 1, kind: input, shape index: {}]
  %s2 = inlined_call_operand.vmem [shape: f32[8], index: 2, kind: input, shape index: {}]
  %s3 = inlined_call_operand.hbm [shape: f32[1,1], index: 3, kind: output, shape index: {}]
  %s4 = sld [smem:[#allocation0]]
  $region30: #{model_forward.1} parent=0
    _
  %s6 = ssub.s32 1, %s4
  %s7 = scalar_select 0, %s6, %s4
  $region1: #{model_forward.1} parent=0
    #allocation2 [shape = 'u8[512]{0}', space=smem, size = 0x200, scoped, tag = 'input window, operand 1, single buffered']
    #allocation3 [shape = 's32[1]{0}', space=sflag, size = 0x4, scoped, tag = 'scoped memory for model_forward.1']
    #allocation4 [shape = 's32[1]{0}', space=sflag, size = 0x4, scoped, tag = 'scoped memory for model_forward.1']
    #allocation5 [shape = 'u8[512]{0}', space=smem, size = 0x200, scoped, tag = 'input window, operand 2, single buffered']
    #allocation6 [shape = 's32[1]{0}', space=sflag, size = 0x4, scoped, tag = 'scoped memory for model_forward.1']
    #allocation7 [shape = 'u8[512]{0}', space=vmem, size = 0x400, scoped, tag = 'output window, operand 0, single buffered']
    %8 = vsyncpa [#allocation4], 0
    %9 = vsyncpa [#allocation6], 0
    %10 = vsyncpa [#allocation3], 0
    // Predicated region
    $region2: #{model_forward.1} parent=1 // pred_check
      _
    $region3: #{model_forward.1} parent=1 // pred_check_branch
      %12 = sbr.rel (0) target = $region5
    $region4: #{model_forward.1} parent=1 // pred_region
      _
    $region5: #{model_forward.1} parent=1 // pred_fallthru
      _
    // Predicated region
    $region6: #{model_forward.1} parent=1 // pred_check
      _
    $region7: #{model_forward.1} parent=1 // pred_check_branch
      %14 = sbr.rel (0) target = $region9
    $region8: #{model_forward.1} parent=1 // pred_region
      %16 = vsyncadd [#allocation4], 0
      %s18 = sshll.u32 %s1, 4
      %s19 = int_to_ptr.vmem [resolvable:$true] %s18
      %21 = dma.vmem_to_smem %s19, 16, [#allocation2], [#allocation4]
    $region9: #{model_forward.1} parent=1 // pred_fallthru
      _
    // Predicated region
    $region10: #{model_forward.1} parent=1 // pred_check
      _
    $region11: #{model_forward.1} parent=1 // pred_check_branch
      %23 = sbr.rel (0) target = $region13
    $region12: #{model_forward.1} parent=1 // pred_region
      %25 = vsyncadd [#allocation6], 0
      %s27 = sshll.u32 %s2, 4
      %s28 = int_to_ptr.vmem [resolvable:$true] %s27
      %30 = dma.vmem_to_smem %s28, 16, [#allocation5], [#allocation6]
    $region13: #{model_forward.1} parent=1 // pred_fallthru
      _
    // Predicated region
    $region14: #{model_forward.1} parent=1 // pred_check
      _
    $region15: #{model_forward.1} parent=1 // pred_check_branch
      %32 = sbr.rel (0) target = $region17
    $region16: #{model_forward.1} parent=1 // pred_region
      %34 = dma.done [#allocation4], 16
    $region17: #{model_forward.1} parent=1 // pred_fallthru
      _
    // Predicated region
    $region18: #{model_forward.1} parent=1 // pred_check
      _
    $region19: #{model_forward.1} parent=1 // pred_check_branch
      %36 = sbr.rel (0) target = $region21
    $region20: #{model_forward.1} parent=1 // pred_region
      %38 = dma.done [#allocation6], 16
    $region21: #{model_forward.1} parent=1 // pred_fallthru
      _
    %39 = sfence
    %s40 = sld [smem:[#allocation2]]
    %s41 = sadd.f32 %s40, 0.0
    %s42 = sld [smem:[#allocation2 + $0x1]]
    %s43 = sadd.f32 %s41, %s42
    %s44 = sld [smem:[#allocation2 + $0x2]]
    %s45 = sadd.f32 %s43, %s44
    %s46 = sld [smem:[#allocation2 + $0x3]]
    %s47 = sadd.f32 %s45, %s46
    %s48 = sld [smem:[#allocation2 + $0xc]]
    %s49 = sadd.f32 %s47, %s48
    %s50 = sld [smem:[#allocation2 + $0xd]]
    %s51 = sadd.f32 %s49, %s50
    %s52 = sld [smem:[#allocation2 + $0xe]]
    %s53 = sadd.f32 %s51, %s52
    %s54 = sld [smem:[#allocation2 + $0xf]]
    %s55 = sadd.f32 %s53, %s54
    %s56 = sld [smem:[#allocation2 + $0x18]]
    %s57 = sadd.f32 %s55, %s56
    %s58 = sld [smem:[#allocation2 + $0x19]]
    %s59 = sadd.f32 %s57, %s58
    %s60 = sld [smem:[#allocation2 + $0x1a]]
    %s61 = sadd.f32 %s59, %s60
    %s62 = sld [smem:[#allocation2 + $0x1b]]
    %s63 = sadd.f32 %s61, %s62
    %s64 = sld [smem:[#allocation2 + $0x24]]
    %s65 = sadd.f32 %s63, %s64
    %s66 = sld [smem:[#allocation2 + $0x25]]
    %s67 = sadd.f32 %s65, %s66
    %s68 = sld [smem:[#allocation2 + $0x26]]
    %s69 = sadd.f32 %s67, %s68
    %s70 = sld [smem:[#allocation2 + $0x27]]
    %s71 = sadd.f32 %s69, %s70
    %s72 = sld [smem:[#allocation2 + $0x30]]
    %s73 = sadd.f32 %s71, %s72
    %s74 = sld [smem:[#allocation2 + $0x31]]
    %s75 = sadd.f32 %s73, %s74
    %s76 = sld [smem:[#allocation2 + $0x32]]
    %s77 = sadd.f32 %s75, %s76
    %s78 = sld [smem:[#allocation2 + $0x33]]
    %s79 = sadd.f32 %s77, %s78
    %s80 = sld [smem:[#allocation2 + $0x3c]]
    %s81 = sadd.f32 %s79, %s80
    %s82 = sld [smem:[#allocation2 + $0x3d]]
    %s83 = sadd.f32 %s81, %s82
    %s84 = sld [smem:[#allocation2 + $0x3e]]
    %s85 = sadd.f32 %s83, %s84
    %s86 = sld [smem:[#allocation2 + $0x3f]]
    %s87 = sadd.f32 %s85, %s86
    %s88 = sld [smem:[#allocation2 + $0x48]]
    %s89 = sadd.f32 %s87, %s88
    %s90 = sld [smem:[#allocation2 + $0x49]]
    %s91 = sadd.f32 %s89, %s90
    %s92 = sld [smem:[#allocation2 + $0x4a]]
    %s93 = sadd.f32 %s91, %s92
    %s94 = sld [smem:[#allocation2 + $0x4b]]
    %s95 = sadd.f32 %s93, %s94
    %s96 = sld [smem:[#allocation2 + $0x54]]
    %s97 = sadd.f32 %s95, %s96
    %s98 = sld [smem:[#allocation2 + $0x55]]
    %s99 = sadd.f32 %s97, %s98
    %s100 = sld [smem:[#allocation2 + $0x56]]
    %s101 = sadd.f32 %s99, %s100
    %s102 = sld [smem:[#allocation2 + $0x57]]
    %s103 = sadd.f32 %s101, %s102
    %s104 = sld [smem:[#allocation2 + $0x4]]
    %s105 = sadd.f32 %s104, 0.0
    %s106 = sld [smem:[#allocation2 + $0x5]]
    %s107 = sadd.f32 %s105, %s106
    %s108 = sld [smem:[#allocation2 + $0x6]]
    %s109 = sadd.f32 %s107, %s108
    %s110 = sld [smem:[#allocation2 + $0x7]]
    %s111 = sadd.f32 %s109, %s110
    %s112 = sld [smem:[#allocation2 + $0x10]]
    %s113 = sadd.f32 %s111, %s112
    %s114 = sld [smem:[#allocation2 + $0x11]]
    %s115 = sadd.f32 %s113, %s114
    %s116 = sld [smem:[#allocation2 + $0x12]]
    %s117 = sadd.f32 %s115, %s116
    %s118 = sld [smem:[#allocation2 + $0x13]]
    %s119 = sadd.f32 %s117, %s118
    %s120 = sld [smem:[#allocation2 + $0x1c]]
    %s121 = sadd.f32 %s119, %s120
    %s122 = sld [smem:[#allocation2 + $0x1d]]
    %s123 = sadd.f32 %s121, %s122
    %s124 = sld [smem:[#allocation2 + $0x1e]]
    %s125 = sadd.f32 %s123, %s124
    %s126 = sld [smem:[#allocation2 + $0x1f]]
    %s127 = sadd.f32 %s125, %s126
    %s128 = sld [smem:[#allocation2 + $0x28]]
    %s129 = sadd.f32 %s127, %s128
    %s130 = sld [smem:[#allocation2 + $0x29]]
    %s131 = sadd.f32 %s129, %s130
    %s132 = sld [smem:[#allocation2 + $0x2a]]
    %s133 = sadd.f32 %s131, %s132
    %s134 = sld [smem:[#allocation2 + $0x2b]]
    %s135 = sadd.f32 %s133, %s134
    %s136 = sld [smem:[#allocation2 + $0x34]]
    %s137 = sadd.f32 %s135, %s136
    %s138 = sld [smem:[#allocation2 + $0x35]]
    %s139 = sadd.f32 %s137, %s138
    %s140 = sld [smem:[#allocation2 + $0x36]]
    %s141 = sadd.f32 %s139, %s140
    %s142 = sld [smem:[#allocation2 + $0x37]]
    %s143 = sadd.f32 %s141, %s142
    %s144 = sld [smem:[#allocation2 + $0x40]]
    %s145 = sadd.f32 %s143, %s144
    %s146 = sld [smem:[#allocation2 + $0x41]]
    %s147 = sadd.f32 %s145, %s146
    %s148 = sld [smem:[#allocation2 + $0x42]]
    %s149 = sadd.f32 %s147, %s148
    %s150 = sld [smem:[#allocation2 + $0x43]]
    %s151 = sadd.f32 %s149, %s150
    %s152 = sld [smem:[#allocation2 + $0x4c]]
    %s153 = sadd.f32 %s151, %s152
    %s154 = sld [smem:[#allocation2 + $0x4d]]
    %s155 = sadd.f32 %s153, %s154
    %s156 = sld [smem:[#allocation2 + $0x4e]]
    %s157 = sadd.f32 %s155, %s156
    %s158 = sld [smem:[#allocation2 + $0x4f]]
    %s159 = sadd.f32 %s157, %s158
    %s160 = sld [smem:[#allocation2 + $0x58]]
    %s161 = sadd.f32 %s159, %s160
    %s162 = sld [smem:[#allocation2 + $0x59]]
    %s163 = sadd.f32 %s161, %s162
    %s164 = sld [smem:[#allocation2 + $0x5a]]
    %s165 = sadd.f32 %s163, %s164
    %s166 = sld [smem:[#allocation2 + $0x5b]]
    %s167 = sadd.f32 %s165, %s166
    %s168 = sld [smem:[#allocation2 + $0x8]]
    %s169 = sadd.f32 %s168, 0.0
    %s170 = sld [smem:[#allocation2 + $0x9]]
    %s171 = sadd.f32 %s169, %s170
    %s172 = sld [smem:[#allocation2 + $0xa]]
    %s173 = sadd.f32 %s171, %s172
    %s174 = sld [smem:[#allocation2 + $0xb]]
    %s175 = sadd.f32 %s173, %s174
    %s176 = sld [smem:[#allocation2 + $0x14]]
    %s177 = sadd.f32 %s175, %s176
    %s178 = sld [smem:[#allocation2 + $0x15]]
    %s179 = sadd.f32 %s177, %s178
    %s180 = sld [smem:[#allocation2 + $0x16]]
    %s181 = sadd.f32 %s179, %s180
    %s182 = sld [smem:[#allocation2 + $0x17]]
    %s183 = sadd.f32 %s181, %s182
    %s184 = sld [smem:[#allocation2 + $0x20]]
    %s185 = sadd.f32 %s183, %s184
    %s186 = sld [smem:[#allocation2 + $0x21]]
    %s187 = sadd.f32 %s185, %s186
    %s188 = sld [smem:[#allocation2 + $0x22]]
    %s189 = sadd.f32 %s187, %s188
    %s190 = sld [smem:[#allocation2 + $0x23]]
    %s191 = sadd.f32 %s189, %s190
    %s192 = sld [smem:[#allocation2 + $0x2c]]
    %s193 = sadd.f32 %s191, %s192
    %s194 = sld [smem:[#allocation2 + $0x2d]]
    %s195 = sadd.f32 %s193, %s194
    %s196 = sld [smem:[#allocation2 + $0x2e]]
    %s197 = sadd.f32 %s195, %s196
    %s198 = sld [smem:[#allocation2 + $0x2f]]
    %s199 = sadd.f32 %s197, %s198
    %s200 = sld [smem:[#allocation2 + $0x38]]
    %s201 = sadd.f32 %s199, %s200
    %s202 = sld [smem:[#allocation2 + $0x39]]
    %s203 = sadd.f32 %s201, %s202
    %s204 = sld [smem:[#allocation2 + $0x3a]]
    %s205 = sadd.f32 %s203, %s204
    %s206 = sld [smem:[#allocation2 + $0x3b]]
    %s207 = sadd.f32 %s205, %s206
    %s208 = sld [smem:[#allocation2 + $0x44]]
    %s209 = sadd.f32 %s207, %s208
    %s210 = sld [smem:[#allocation2 + $0x45]]
    %s211 = sadd.f32 %s209, %s210
    %s212 = sld [smem:[#allocation2 + $0x46]]
    %s213 = sadd.f32 %s211, %s212
    %s214 = sld [smem:[#allocation2 + $0x47]]
    %s215 = sadd.f32 %s213, %s214
    %s216 = sld [smem:[#allocation2 + $0x50]]
    %s217 = sadd.f32 %s215, %s216
    %s218 = sld [smem:[#allocation2 + $0x51]]
    %s219 = sadd.f32 %s217, %s218
    %s220 = sld [smem:[#allocation2 + $0x52]]
    %s221 = sadd.f32 %s219, %s220
    %s222 = sld [smem:[#allocation2 + $0x53]]
    %s223 = sadd.f32 %s221, %s222
    %s224 = sld [smem:[#allocation2 + $0x5c]]
    %s225 = sadd.f32 %s223, %s224
    %s226 = sld [smem:[#allocation2 + $0x5d]]
    %s227 = sadd.f32 %s225, %s226
    %s228 = sld [smem:[#allocation2 + $0x5e]]
    %s229 = sadd.f32 %s227, %s228
    %s230 = sld [smem:[#allocation2 + $0x5f]]
    %s231 = sadd.f32 %s229, %s230
    %s232 = sld [smem:[#allocation5]]
    %s233 = sadd.f32 %s232, 0.0
    %s234 = sld [smem:[#allocation5 + $0x1]]
    %s235 = sadd.f32 %s233, %s234
    %s236 = sld [smem:[#allocation5 + $0x2]]
    %s237 = sadd.f32 %s235, %s236
    %s238 = sld [smem:[#allocation5 + $0x3]]
    %s239 = sadd.f32 %s237, %s238
    %s240 = sld [smem:[#allocation5 + $0x4]]
    %s241 = sadd.f32 %s239, %s240
    %s242 = sld [smem:[#allocation5 + $0x5]]
    %s243 = sadd.f32 %s241, %s242
    %s244 = sld [smem:[#allocation5 + $0x6]]
    %s245 = sadd.f32 %s243, %s244
    %s246 = sld [smem:[#allocation5 + $0x7]]
    %s247 = sadd.f32 %s245, %s246
    %v248 = vld [vmem:[%s0] sm:$0xff]
    %v249 = vld [vmem:[%s0 + $0x8] sm:$0xff]
    %v250 = vld [vmem:[%s0 + $0x10] sm:$0xff]
    %v251 = vld [vmem:[%s0 + $0x18] sm:$0xff]
    %v252 = vld [vmem:[%s0 + $0x20] sm:$0xff]
    %v253 = vld [vmem:[%s0 + $0x28] sm:$0xff]
    %v254 = vld [vmem:[%s0 + $0x30] sm:$0xff]
    %v255 = vld [vmem:[%s0 + $0x38] sm:$0xff]
    %v256 = vadd.f32 %v248, %v249
    %v257 = vadd.f32 %v256, %v250
    %v258 = vadd.f32 %v257, %v251
    %v259 = vadd.f32 %v258, %v252
    %v260 = vadd.f32 %v259, %v253
    %v261 = vadd.f32 %v260, %v254
    %v262 = vadd.f32 %v261, %v255
    %v263 = vrot.slane %v262, 4
    %v264 = vadd.f32 %v262, %v263
    %v265 = vrot.slane %v264, 2
    %v266 = vadd.f32 %v264, %v265
    %v267 = vrot.slane %v266, 1
    %v268 = vadd.f32 %v266, %v267
    %v269 = vstv %s103
    %v270 = vmul.f32 %v269, %v268
    %s271 = scalar_lea.vmem %s0, 64
    %v272 = vld [vmem:[%s271] sm:$0xff]
    %v273 = vld [vmem:[%s271 + $0x8] sm:$0xff]
    %v274 = vld [vmem:[%s271 + $0x10] sm:$0xff]
    %v275 = vld [vmem:[%s271 + $0x18] sm:$0xff]
    %v276 = vld [vmem:[%s271 + $0x20] sm:$0xff]
    %v277 = vld [vmem:[%s271 + $0x28] sm:$0xff]
    %v278 = vld [vmem:[%s271 + $0x30] sm:$0xff]
    %v279 = vld [vmem:[%s271 + $0x38] sm:$0xff]
    %v280 = vadd.f32 %v272, %v273
    %v281 = vadd.f32 %v280, %v274
    %v282 = vadd.f32 %v281, %v275
    %v283 = vadd.f32 %v282, %v276
    %v284 = vadd.f32 %v283, %v277
    %v285 = vadd.f32 %v284, %v278
    %v286 = vadd.f32 %v285, %v279
    %v287 = vrot.slane %v286, 4
    %v288 = vadd.f32 %v286, %v287
    %v289 = vrot.slane %v288, 2
    %v290 = vadd.f32 %v288, %v289
    %v291 = vrot.slane %v290, 1
    %v292 = vadd.f32 %v290, %v291
    %v293 = vstv %s167
    %v294 = vmul.f32 %v293, %v292
    %v295 = vadd.f32 %v270, %v294
    %s296 = scalar_lea.vmem %s0, 128
    %v297 = vld [vmem:[%s296] sm:$0xff]
    %v298 = vld [vmem:[%s296 + $0x8] sm:$0xff]
    %v299 = vld [vmem:[%s296 + $0x10] sm:$0xff]
    %v300 = vld [vmem:[%s296 + $0x18] sm:$0xff]
    %v301 = vld [vmem:[%s296 + $0x20] sm:$0xff]
    %v302 = vld [vmem:[%s296 + $0x28] sm:$0xff]
    %v303 = vld [vmem:[%s296 + $0x30] sm:$0xff]
    %v304 = vld [vmem:[%s296 + $0x38] sm:$0xff]
    %v305 = vadd.f32 %v297, %v298
    %v306 = vadd.f32 %v305, %v299
    %v307 = vadd.f32 %v306, %v300
    %v308 = vadd.f32 %v307, %v301
    %v309 = vadd.f32 %v308, %v302
    %v310 = vadd.f32 %v309, %v303
    %v311 = vadd.f32 %v310, %v304
    %v312 = vrot.slane %v311, 4
    %v313 = vadd.f32 %v311, %v312
    %v314 = vrot.slane %v313, 2
    %v315 = vadd.f32 %v313, %v314
    %v316 = vrot.slane %v315, 1
    %v317 = vadd.f32 %v315, %v316
    %v318 = vstv %s231
    %v319 = vmul.f32 %v318, %v317
    %v320 = vadd.f32 %v295, %v319
    %vm321 = vcmask 1040384
    %v322 = vsel %vm321, %v320, 0.0
    %323 = vadd.xlane.f32.xlu0 %v322
    %v324 = vpop.xlane.xlu0 %323
    %v325 = vrot.slane %v324, 4
    %v326 = vadd.f32 %v324, %v325
    %v327 = vrot.slane %v326, 2
    %v328 = vadd.f32 %v326, %v327
    %v329 = vrot.slane %v328, 1
    %v330 = vadd.f32 %v328, %v329
    %s331 = vtos %v330
    %v332 = vstv %s331
    %s333 = smul.f32 %s247, 8976.0
    %v334 = vstv %s333
    %v335 = vadd.f32 %v332, %v334
    %v336 = vmul.f32 %v335, 1.3926025e-05
    %v337 = vxor.u32 %v336, 2147483648
    %v338 = vmul.f32 %v337, 1.442695
    %v339 = vpow.pop %v338
    %v340 = vadd.f32 %v339, 1.0
    %v341 = vrcp.pop %v340
    %v342 = vmul.f32 %v340, %v341
    %v343 = vsub.f32 1.0, %v342
    %v344 = vmul.f32 %v341, %v343
    %v345 = vadd.f32 %v341, %v344
    %vm346 = vweird.f32 %v340
    %vm347 = vweird.f32 %v341
    %vm348 = vmor %vm346, %vm347
    %v349 = vsel %vm348, %v341, %v345
    %v350 = vand.u32 2147483647, %v340
    %vm351 = vcmp.eq.f32.partialorder %v350, 8.507059e+37
    %v352 = vand.u32 %v340, 2147483648
    %v353 = vor.u32 1.1754944e-38, %v352
    %v354 = vsel %vm351, %v353, %v349
    %v355 = vmul.f32 1.0, %v354
    %v356 = vadd.f32 %v355, 10.0
    %vm357 = vcmask 0
    %358 = vst.msk [vmem:[#allocation7] sm:$0x1] %vm357, %v356
    // Predicated region
    $region22: #{model_forward.1} parent=1 // pred_check
      _
    $region23: #{model_forward.1} parent=1 // pred_check_branch
      %360 = sbr.rel (0) target = $region25
    $region24: #{model_forward.1} parent=1 // pred_region
      %362 = vsyncadd [#allocation3], 0
      %s364 = sshll.u32 [#allocation7], 4
      %s365 = int_to_ptr.vmem [resolvable:$true] %s364
      %s366 = sshll.u32 %s3, 4
      %s367 = int_to_ptr.hbm [resolvable:$true] %s366
      %369 = dma.vmem_to_hbm [thread:$0]  %s365, 16, %s367, [#allocation3]
    $region25: #{model_forward.1} parent=1 // pred_fallthru
      _
    // Predicated region
    $region26: #{model_forward.1} parent=1 // pred_check
      _
    $region27: #{model_forward.1} parent=1 // pred_check_branch
      %371 = sbr.rel (0) target = $region29
    $region28: #{model_forward.1} parent=1 // pred_region
      %373 = dma.done [#allocation3], 16
    $region29: #{model_forward.1} parent=1 // pred_fallthru
      _
    %374 = vsyncpa [#allocation3], 1
    %375 = vsyncpa [#allocation4], 1
    %376 = vsyncpa [#allocation6], 1

</llo_original>
